<compile_context>
chip_gen: v5e
topology: v5e:2x2
jax: 0.10.0
libtpu: 0.0.40
codegen_flags: <defaults>
</compile_context>

<pallas_src>
import jax
import jax.numpy as jnp
from jax.experimental import pallas as pl
from jax.experimental.pallas import tpu as pltpu


def _blink_encoder_kernel(x_ref, w1_ref, b1_ref, w2_ref, b2_ref, out_ref):
    x = x_ref[...]                       # (TB, 3)   f32
    w1 = w1_ref[...]                     # (3, 3)
    b1 = b1_ref[...]                     # (1, 3)
    w2 = w2_ref[...]                     # (3, 256)
    b2 = b2_ref[...]                     # (1, 256)

    # fc1 + ReLU: h = relu(x @ w1 + b1), K=3 unrolled as broadcast FMAs (VPU).
    h = b1
    for k in range(3):                   # static unroll, traced once
        h = h + x[:, k:k + 1] * w1[k:k + 1, :]          # (TB,1)*(1,3) -> (TB,3)
    h = jnp.maximum(h, 0.0)

    # fc2 + Sigmoid: net = h @ w2 + b2, K=3 unrolled as broadcast FMAs.
    net = b2
    for k in range(3):
        net = net + h[:, k:k + 1] * w2[k:k + 1, :]      # (TB,1)*(1,256) -> (TB,256)

    # Lane-dense (TB, 256) store; sigmoid's exp rides the (idle) EUP slot.
    out_ref[...] = jax.nn.sigmoid(net)


def blink_encoder_forward(x, w1, b1, w2, b2, *, tile_b=1024):
    """x: (B, 3) f32; returns (B, 256) f32."""
    B = x.shape[0]

    # Batch tile: multiple of 8, capped at tile_b (kept well under v7x's
    # 64 MiB VMEM: 2 x (1024 x 256 x 4B) output buffers ~= 2 MiB).
    TB = min(tile_b, ((B + 7) // 8) * 8)
    TB = ((TB + 7) // 8) * 8

    # Pad batch so the grid tiles evenly; slice the result back afterwards.
    B_pad = ((B + TB - 1) // TB) * TB
    x_in = jnp.pad(x, ((0, B_pad - B), (0, 0))) if B_pad != B else x

    grid = (B_pad // TB,)

    out = pl.pallas_call(
        _blink_encoder_kernel,
        out_shape=jax.ShapeDtypeStruct((B_pad, 256), jnp.float32),
        grid=grid,
        in_specs=[
            pl.BlockSpec((TB, 3), lambda i: (i, 0)),     # x: tiled over batch
            pl.BlockSpec((3, 3), lambda i: (0, 0)),      # w1: resident
            pl.BlockSpec((1, 3), lambda i: (0, 0)),      # b1: resident
            pl.BlockSpec((3, 256), lambda i: (0, 0)),    # w2: resident
            pl.BlockSpec((1, 256), lambda i: (0, 0)),    # b2: resident
        ],
        out_specs=pl.BlockSpec((TB, 256), lambda i: (i, 0)),
        compiler_params=pltpu.CompilerParams(
            dimension_semantics=("parallel",)),          # shard over TCs (v7x)
    )(x_in, w1, b1, w2, b2)

    return out[:B] if B_pad != B else out


def init_params(key):
    """Deterministic init mimicking torch.nn.Linear default (uniform ±1/sqrt(fan_in))."""
    k1, k2, k3, k4 = jax.random.split(key, 4)
    bound = 1.0 / jnp.sqrt(3.0)          # fan_in = 3 for both layers
    # Stored as (in, out) so the kernel computes y = x @ W + b (== torch x @ W_t.T + b).
    w1 = jax.random.uniform(k1, (3, 3), jnp.float32, -bound, bound)
    b1 = jax.random.uniform(k2, (1, 3), jnp.float32, -bound, bound)
    w2 = jax.random.uniform(k3, (3, 256), jnp.float32, -bound, bound)
    b2 = jax.random.uniform(k4, (1, 256), jnp.float32, -bound, bound)
    return w1, b1, w2, b2


def reference_forward(x, w1, b1, w2, b2):
    h = jnp.maximum(x @ w1 + b1, 0.0)
    return jax.nn.sigmoid(h @ w2 + b2)


if __name__ == "__main__":
    key = jax.random.PRNGKey(0)
    k_x, k_x2, k_p = jax.random.split(key, 3)
    w1, b1, w2, b2 = init_params(k_p)

    # Small batch, exact multiple of 8.
    B = 8
    x = jax.random.normal(k_x, (B, 3), jnp.float32)
    out = jax.block_until_ready(blink_encoder_forward(x, w1, b1, w2, b2))
    ref = reference_forward(x, w1, b1, w2, b2)
    assert out.shape == (B, 256), out.shape
    assert jnp.allclose(out, ref, atol=1e-5, rtol=1e-5), "mismatch vs reference (B=8)"

    # Ragged batch exercises the pad/slice path.
    B2 = 37
    x2 = jax.random.normal(k_x2, (B2, 3), jnp.float32)
    out2 = jax.block_until_ready(blink_encoder_forward(x2, w1, b1, w2, b2))
    ref2 = reference_forward(x2, w1, b1, w2, b2)
    assert out2.shape == (B2, 256), out2.shape
    assert jnp.allclose(out2, ref2, atol=1e-5, rtol=1e-5), "mismatch vs reference (B=37)"

    print("KERNEL_OK")
</pallas_src>

<mosaic_0001>
module attributes {stable_mosaic.version = 11 : i64} {
  func.func @_blink_encoder_kernel(%arg0: i32, %arg1: memref<8x3xf32, #tpu.memory_space<vmem>>, %arg2: memref<3x3xf32, #tpu.memory_space<vmem>>, %arg3: memref<1x3xf32, #tpu.memory_space<vmem>>, %arg4: memref<3x256xf32, #tpu.memory_space<vmem>>, %arg5: memref<1x256xf32, #tpu.memory_space<vmem>>, %arg6: memref<8x256xf32, #tpu.memory_space<vmem>>) attributes {dimension_semantics = [#tpu.dimension_semantics<parallel>], iteration_bounds = array<i64: 1>, scalar_prefetch = 0 : i64, scratch_operands = 0 : i64, tpu.core_type = #tpu.core_type<tc>, window_params = [{transform_indices = @transform_0, window_bounds = array<i64: 8, 3>}, {pipeline_mode = #tpu.pipeline_mode<synchronous>, transform_indices = @transform_1, window_bounds = array<i64: 3, 3>}, {pipeline_mode = #tpu.pipeline_mode<synchronous>, transform_indices = @transform_2, window_bounds = array<i64: 1, 3>}, {pipeline_mode = #tpu.pipeline_mode<synchronous>, transform_indices = @transform_3, window_bounds = array<i64: 3, 256>}, {pipeline_mode = #tpu.pipeline_mode<synchronous>, transform_indices = @transform_4, window_bounds = array<i64: 1, 256>}, {transform_indices = @transform_5, window_bounds = array<i64: 8, 256>}]} {
    %c0 = arith.constant 0 : index
    %c0_0 = arith.constant 0 : index
    %0 = vector.load %arg1[%c0, %c0_0] : memref<8x3xf32, #tpu.memory_space<vmem>>, vector<8x3xf32>
    %c0_1 = arith.constant 0 : index
    %c0_2 = arith.constant 0 : index
    %1 = vector.load %arg2[%c0_1, %c0_2] : memref<3x3xf32, #tpu.memory_space<vmem>>, vector<3x3xf32>
    %c0_3 = arith.constant 0 : index
    %c0_4 = arith.constant 0 : index
    %2 = vector.load %arg3[%c0_3, %c0_4] : memref<1x3xf32, #tpu.memory_space<vmem>>, vector<1x3xf32>
    %c0_5 = arith.constant 0 : index
    %c0_6 = arith.constant 0 : index
    %3 = vector.load %arg4[%c0_5, %c0_6] : memref<3x256xf32, #tpu.memory_space<vmem>>, vector<3x256xf32>
    %c0_7 = arith.constant 0 : index
    %c0_8 = arith.constant 0 : index
    %4 = vector.load %arg5[%c0_7, %c0_8] : memref<1x256xf32, #tpu.memory_space<vmem>>, vector<1x256xf32>
    %5 = vector.extract_strided_slice %0 {offsets = [0, 0], sizes = [8, 1], strides = [1, 1]} : vector<8x3xf32> to vector<8x1xf32>
    %6 = vector.extract_strided_slice %1 {offsets = [0, 0], sizes = [1, 3], strides = [1, 1]} : vector<3x3xf32> to vector<1x3xf32>
    %7 = vector.broadcast %5 : vector<8x1xf32> to vector<8x3xf32>
    %8 = vector.broadcast %6 : vector<1x3xf32> to vector<8x3xf32>
    %9 = arith.mulf %7, %8 : vector<8x3xf32>
    %10 = vector.broadcast %2 : vector<1x3xf32> to vector<8x3xf32>
    %11 = arith.addf %10, %9 : vector<8x3xf32>
    %12 = vector.extract_strided_slice %0 {offsets = [0, 1], sizes = [8, 1], strides = [1, 1]} : vector<8x3xf32> to vector<8x1xf32>
    %13 = vector.extract_strided_slice %1 {offsets = [1, 0], sizes = [1, 3], strides = [1, 1]} : vector<3x3xf32> to vector<1x3xf32>
    %14 = vector.broadcast %12 : vector<8x1xf32> to vector<8x3xf32>
    %15 = vector.broadcast %13 : vector<1x3xf32> to vector<8x3xf32>
    %16 = arith.mulf %14, %15 : vector<8x3xf32>
    %17 = arith.addf %11, %16 : vector<8x3xf32>
    %18 = vector.extract_strided_slice %0 {offsets = [0, 2], sizes = [8, 1], strides = [1, 1]} : vector<8x3xf32> to vector<8x1xf32>
    %19 = vector.extract_strided_slice %1 {offsets = [2, 0], sizes = [1, 3], strides = [1, 1]} : vector<3x3xf32> to vector<1x3xf32>
    %20 = vector.broadcast %18 : vector<8x1xf32> to vector<8x3xf32>
    %21 = vector.broadcast %19 : vector<1x3xf32> to vector<8x3xf32>
    %22 = arith.mulf %20, %21 : vector<8x3xf32>
    %23 = arith.addf %17, %22 : vector<8x3xf32>
    %cst = arith.constant 0.000000e+00 : f32
    %24 = vector.broadcast %cst : f32 to vector<8x3xf32>
    %25 = arith.maximumf %23, %24 : vector<8x3xf32>
    %26 = vector.extract_strided_slice %25 {offsets = [0, 0], sizes = [8, 1], strides = [1, 1]} : vector<8x3xf32> to vector<8x1xf32>
    %27 = vector.extract_strided_slice %3 {offsets = [0, 0], sizes = [1, 256], strides = [1, 1]} : vector<3x256xf32> to vector<1x256xf32>
    %28 = vector.broadcast %26 : vector<8x1xf32> to vector<8x256xf32>
    %29 = vector.broadcast %27 : vector<1x256xf32> to vector<8x256xf32>
    %30 = arith.mulf %28, %29 : vector<8x256xf32>
    %31 = vector.broadcast %4 : vector<1x256xf32> to vector<8x256xf32>
    %32 = arith.addf %31, %30 : vector<8x256xf32>
    %33 = vector.extract_strided_slice %25 {offsets = [0, 1], sizes = [8, 1], strides = [1, 1]} : vector<8x3xf32> to vector<8x1xf32>
    %34 = vector.extract_strided_slice %3 {offsets = [1, 0], sizes = [1, 256], strides = [1, 1]} : vector<3x256xf32> to vector<1x256xf32>
    %35 = vector.broadcast %33 : vector<8x1xf32> to vector<8x256xf32>
    %36 = vector.broadcast %34 : vector<1x256xf32> to vector<8x256xf32>
    %37 = arith.mulf %35, %36 : vector<8x256xf32>
    %38 = arith.addf %32, %37 : vector<8x256xf32>
    %39 = vector.extract_strided_slice %25 {offsets = [0, 2], sizes = [8, 1], strides = [1, 1]} : vector<8x3xf32> to vector<8x1xf32>
    %40 = vector.extract_strided_slice %3 {offsets = [2, 0], sizes = [1, 256], strides = [1, 1]} : vector<3x256xf32> to vector<1x256xf32>
    %41 = vector.broadcast %39 : vector<8x1xf32> to vector<8x256xf32>
    %42 = vector.broadcast %40 : vector<1x256xf32> to vector<8x256xf32>
    %43 = arith.mulf %41, %42 : vector<8x256xf32>
    %44 = arith.addf %38, %43 : vector<8x256xf32>
    %45 = arith.negf %44 : vector<8x256xf32>
    %46 = math.exp %45 : vector<8x256xf32>
    %cst_9 = arith.constant 1.000000e+00 : f32
    %47 = vector.broadcast %cst_9 : f32 to vector<8x256xf32>
    %48 = arith.addf %47, %46 : vector<8x256xf32>
    %49 = arith.divf %47, %48 : vector<8x256xf32>
    %c0_10 = arith.constant 0 : index
    %c0_11 = arith.constant 0 : index
    %50 = vector.load %arg6[%c0_10, %c0_11] : memref<8x256xf32, #tpu.memory_space<vmem>>, vector<8x256xf32>
    tpu.vector_store %arg6[%c0_10, %c0_11], %49 {strides = array<i32>} : memref<8x256xf32, #tpu.memory_space<vmem>>, vector<8x256xf32>,
    return
  }
  func.func @transform_0(%arg0: i32) -> (i32, i32) {
    %c0_i32 = arith.constant 0 : i32
    %c0_i32_0 = arith.constant 0 : i32
    return %arg0, %c0_i32 : i32, i32
  }
  func.func @transform_1(%arg0: i32) -> (i32, i32) {
    %c0_i32 = arith.constant 0 : i32
    %c0_i32_0 = arith.constant 0 : i32
    %c0_i32_1 = arith.constant 0 : i32
    return %c0_i32, %c0_i32_0 : i32, i32
  }
  func.func @transform_2(%arg0: i32) -> (i32, i32) {
    %c0_i32 = arith.constant 0 : i32
    %c0_i32_0 = arith.constant 0 : i32
    %c0_i32_1 = arith.constant 0 : i32
    return %c0_i32, %c0_i32_0 : i32, i32
  }
  func.func @transform_3(%arg0: i32) -> (i32, i32) {
    %c0_i32 = arith.constant 0 : i32
    %c0_i32_0 = arith.constant 0 : i32
    %c0_i32_1 = arith.constant 0 : i32
    return %c0_i32, %c0_i32_0 : i32, i32
  }
  func.func @transform_4(%arg0: i32) -> (i32, i32) {
    %c0_i32 = arith.constant 0 : i32
    %c0_i32_0 = arith.constant 0 : i32
    %c0_i32_1 = arith.constant 0 : i32
    return %c0_i32, %c0_i32_0 : i32, i32
  }
  func.func @transform_5(%arg0: i32) -> (i32, i32) {
    %c0_i32 = arith.constant 0 : i32
    %c0_i32_0 = arith.constant 0 : i32
    return %arg0, %c0_i32 : i32, i32
  }
}

</mosaic_0001>

<llo_original>
// kernel: tpu_custom_call.1
$region0: #{tpu_custom_call.1}
  #allocation0 [shape = 'u32[]', space=smem, size = 0x4, offset = 0x4, fixed_abs, tag = 'smem constant byte address 0x4 - core index']
  #allocation1 [shape = 'u32[72,128]{1,0:T(1,128)}', space=vmem, size = 0x9000, scoped, tag = 'internal scratch']
  %s0 = inlined_call_operand.vmem [shape: f32[8,3], index: 0, kind: input, shape index: {}]
  %s1 = inlined_call_operand.vmem [shape: f32[3,3], index: 1, kind: input, shape index: {}]
  %s2 = inlined_call_operand.hbm [shape: f32[1,3], index: 2, kind: input, shape index: {}]
  %s3 = inlined_call_operand.vmem [shape: f32[3,256], index: 3, kind: input, shape index: {}]
  %s4 = inlined_call_operand.vmem [shape: f32[1,256], index: 4, kind: input, shape index: {}]
  %s5 = inlined_call_operand.hbm [shape: f32[8,256], index: 5, kind: output, shape index: {}]
  %s6 = sld [smem:[#allocation0]]
  $region34: #{tpu_custom_call.1} parent=0
    _
  %s8 = ssub.s32 1, %s6
  %s9 = scalar_select 0, %s8, %s6
  $region1: #{tpu_custom_call.1} parent=0
    #allocation2 [shape = 'u8[512]{0}', space=vmem, size = 0x400, scoped, tag = 'input window, operand 2, single buffered']
    #allocation3 [shape = 's32[1]{0}', space=sflag, size = 0x4, scoped, tag = 'scoped memory for tpu_custom_call.1']
    #allocation4 [shape = 's32[1]{0}', space=sflag, size = 0x4, scoped, tag = 'scoped memory for tpu_custom_call.1']
    #allocation5 [shape = 'u8[8192]{0}', space=vmem, size = 0x2000, scoped, tag = 'output window, operand 0, single buffered']
    %10 = vsyncpa [#allocation3], 0
    %11 = vsyncpa [#allocation4], 0
    // Predicated region
    $region2: #{tpu_custom_call.1} parent=1 // pred_check
      _
    $region3: #{tpu_custom_call.1} parent=1 // pred_check_branch
      %13 = sbr.rel (0) target = $region5
    $region4: #{tpu_custom_call.1} parent=1 // pred_region
      _
    $region5: #{tpu_custom_call.1} parent=1 // pred_fallthru
      _
    // Predicated region
    $region6: #{tpu_custom_call.1} parent=1 // pred_check
      _
    $region7: #{tpu_custom_call.1} parent=1 // pred_check_branch
      %15 = sbr.rel (0) target = $region9
    $region8: #{tpu_custom_call.1} parent=1 // pred_region
      _
    $region9: #{tpu_custom_call.1} parent=1 // pred_fallthru
      _
    // Predicated region
    $region10: #{tpu_custom_call.1} parent=1 // pred_check
      _
    $region11: #{tpu_custom_call.1} parent=1 // pred_check_branch
      %17 = sbr.rel (0) target = $region13
    $region12: #{tpu_custom_call.1} parent=1 // pred_region
      %19 = vsyncadd [#allocation3], 0
      %s21 = sshll.u32 %s2, 4
      %s22 = int_to_ptr.hbm [resolvable:$true] %s21
      %s23 = sshll.u32 [#allocation2], 4
      %s24 = int_to_ptr.vmem [resolvable:$true] %s23
      %26 = dma.hbm_to_vmem [thread:$0]  %s22, 16, %s24, [#allocation3]
    $region13: #{tpu_custom_call.1} parent=1 // pred_fallthru
      _
    // Predicated region
    $region14: #{tpu_custom_call.1} parent=1 // pred_check
      _
    $region15: #{tpu_custom_call.1} parent=1 // pred_check_branch
      %28 = sbr.rel (0) target = $region17
    $region16: #{tpu_custom_call.1} parent=1 // pred_region
      _
    $region17: #{tpu_custom_call.1} parent=1 // pred_fallthru
      _
    // Predicated region
    $region18: #{tpu_custom_call.1} parent=1 // pred_check
      _
    $region19: #{tpu_custom_call.1} parent=1 // pred_check_branch
      %30 = sbr.rel (0) target = $region21
    $region20: #{tpu_custom_call.1} parent=1 // pred_region
      _
    $region21: #{tpu_custom_call.1} parent=1 // pred_fallthru
      _
    // Predicated region
    $region22: #{tpu_custom_call.1} parent=1 // pred_check
      _
    $region23: #{tpu_custom_call.1} parent=1 // pred_check_branch
      %32 = sbr.rel (0) target = $region25
    $region24: #{tpu_custom_call.1} parent=1 // pred_region
      %34 = dma.done [#allocation3], 16
    $region25: #{tpu_custom_call.1} parent=1 // pred_fallthru
      _
    %v35 = vld [vmem:[%s0] sm:$0xff]
    %v36 = vld [vmem:[%s1] sm:$0x7]
    %v37 = vld [vmem:[#allocation2] sm:$0x1]
    %v38 = vld [vmem:[%s3] sm:$0x77]
    %v39 = vld [vmem:[%s4] sm:$0x3]
    %41 = vset.pattern.permute.xlu0 0
    %42 = vperm.xlu0 %41, %v35
    %v43 = vpop.permute.xlu0 %42
    %v45 = vperm.slane %v36, 0
    %v46 = vmul.f32 %v43, %v45
    %v48 = vperm.slane %v37, 0
    %v50 = vadd.f32 %v48, %v46
    %51 = vset.pattern.permute.xlu0 1
    %52 = vperm.xlu0 %51, %v35
    %v53 = vpop.permute.xlu0 %52
    %v55 = vperm.slane %v36, 1
    %v56 = vmul.f32 %v53, %v55
    %v57 = vadd.f32 %v50, %v56
    %58 = vset.pattern.permute.xlu0 2
    %59 = vperm.xlu0 %58, %v35
    %v60 = vpop.permute.xlu0 %59
    %v62 = vperm.slane %v36, 2
    %v63 = vmul.f32 %v60, %v62
    %v64 = vadd.f32 %v57, %v63
    %v65 = vmax.f32 %v64, 0.0
    %67 = vset.pattern.permute.xlu0 0
    %68 = vperm.xlu0 %67, %v65
    %v69 = vpop.permute.xlu0 %68
    %v72 = vperm.slane %v38, 0
    %v73 = vperm.slane %v38, 4
    %v76 = vperm.slane %v72, 0
    %v77 = vperm.slane %v73, 0
    %v78 = vmul.f32 %v69, %v76
    %v79 = vmul.f32 %v69, %v77
    %v81 = vperm.slane %v39, 0
    %v82 = vperm.slane %v39, 1
    %v85 = vadd.f32 %v81, %v78
    %v86 = vadd.f32 %v82, %v79
    %87 = vset.pattern.permute.xlu0 1
    %88 = vperm.xlu0 %87, %v65
    %v89 = vpop.permute.xlu0 %88
    %v91 = vperm.slane %v38, 1
    %v92 = vperm.slane %v38, 5
    %v95 = vperm.slane %v91, 1
    %v96 = vperm.slane %v92, 1
    %v97 = vmul.f32 %v89, %v95
    %v98 = vmul.f32 %v89, %v96
    %v99 = vadd.f32 %v85, %v97
    %v100 = vadd.f32 %v86, %v98
    %101 = vset.pattern.permute.xlu0 2
    %102 = vperm.xlu0 %101, %v65
    %v103 = vpop.permute.xlu0 %102
    %v105 = vperm.slane %v38, 2
    %v106 = vperm.slane %v38, 6
    %v109 = vperm.slane %v105, 2
    %v110 = vperm.slane %v106, 2
    %v111 = vmul.f32 %v103, %v109
    %v112 = vmul.f32 %v103, %v110
    %v113 = vadd.f32 %v99, %v111
    %v114 = vadd.f32 %v100, %v112
    %v115 = vxor.u32 %v113, 2147483648
    %v116 = vxor.u32 %v114, 2147483648
    %v117 = vmul.f32 %v115, 1.442695
    %v118 = vpow.pop %v117
    %v119 = vmul.f32 %v116, 1.442695
    %v120 = vpow.pop %v119
    %v121 = vadd.f32 %v118, 1.0
    %v122 = vadd.f32 %v120, 1.0
    %v123 = vrcp.pop %v121
    %v124 = vmul.f32 %v121, %v123
    %v125 = vsub.f32 1.0, %v124
    %v126 = vmul.f32 %v123, %v125
    %v127 = vadd.f32 %v123, %v126
    %vm128 = vweird.f32 %v121
    %vm129 = vweird.f32 %v123
    %vm130 = vmor %vm128, %vm129
    %v131 = vsel %vm130, %v123, %v127
    %v132 = vand.u32 2147483647, %v121
    %vm133 = vcmp.eq.f32.partialorder %v132, 8.507059e+37
    %v134 = vand.u32 %v121, 2147483648
    %v135 = vor.u32 1.1754944e-38, %v134
    %v136 = vsel %vm133, %v135, %v131
    %v137 = vmul.f32 1.0, %v136
    %v138 = vrcp.pop %v122
    %v139 = vmul.f32 %v122, %v138
    %v140 = vsub.f32 1.0, %v139
    %v141 = vmul.f32 %v138, %v140
    %v142 = vadd.f32 %v138, %v141
    %vm143 = vweird.f32 %v122
    %vm144 = vweird.f32 %v138
    %vm145 = vmor %vm143, %vm144
    %v146 = vsel %vm145, %v138, %v142
    %v147 = vand.u32 2147483647, %v122
    %vm148 = vcmp.eq.f32.partialorder %v147, 8.507059e+37
    %v149 = vand.u32 %v122, 2147483648
    %v150 = vor.u32 1.1754944e-38, %v149
    %v151 = vsel %vm148, %v150, %v146
    %v152 = vmul.f32 1.0, %v151
    %153 = vst [vmem:[#allocation5] sm:$0xff] %v137
    %154 = vst [vmem:[#allocation5 + $0x8] sm:$0xff] %v152
    // Predicated region
    $region26: #{tpu_custom_call.1} parent=1 // pred_check
      _
    $region27: #{tpu_custom_call.1} parent=1 // pred_check_branch
      %156 = sbr.rel (0) target = $region29
    $region28: #{tpu_custom_call.1} parent=1 // pred_region
      %158 = vsyncadd [#allocation4], 0
      %s160 = sshll.u32 [#allocation5], 4
      %s161 = int_to_ptr.vmem [resolvable:$true] %s160
      %s162 = sshll.u32 %s5, 4
      %s163 = int_to_ptr.hbm [resolvable:$true] %s162
      %165 = dma.vmem_to_hbm [thread:$0]  %s161, 256, %s163, [#allocation4]
    $region29: #{tpu_custom_call.1} parent=1 // pred_fallthru
      _
    // Predicated region
    $region30: #{tpu_custom_call.1} parent=1 // pred_check
      _
    $region31: #{tpu_custom_call.1} parent=1 // pred_check_branch
      %167 = sbr.rel (0) target = $region33
    $region32: #{tpu_custom_call.1} parent=1 // pred_region
      %169 = dma.done [#allocation4], 256
    $region33: #{tpu_custom_call.1} parent=1 // pred_fallthru
      _
    %170 = vsyncpa [#allocation3], 1
    %171 = vsyncpa [#allocation4], 1

</llo_original>
